<compile_context>
chip_gen: v6e
topology: v6e:2x2x1
jax: 0.10.0
libtpu: 0.0.40
codegen_flags: <defaults>
</compile_context>

<pallas_src>
import functools

import jax
import jax.numpy as jnp
from jax import lax
from jax.experimental import pallas as pl
from jax.experimental.pallas import tpu as pltpu

_LANE = 128
_SUBLANE = 8


def _round_up(x, m):
    return (x + m - 1) // m * m


def _cdiv(a, b):
    return -(-a // b)


@functools.partial(jax.jit, static_argnames=("col_w", "tb", "k_pad", "out_w"))
def _fused_embed_lookup(rid, packed_w, *, col_w, tb, k_pad, out_w):
    """Fused gather+mean for all features via one-hot counts + one MXU matmul.

    rid      : (b_pad, l_total) int32 -- already clamped and offset into the
               packed weight's row space (one row-block per feature).
    packed_w : (k_pad, out_w) float32 -- feature f's owner table occupies its
               row block and output columns [f*E, (f+1)*E).
    col_w    : static tuple, per index-column weight = 1 / L_f of its feature.
    returns  : (b_pad, out_w) float32 lane-dense output slab.
    """
    b_pad, l_total = rid.shape
    assert l_total == len(col_w)
    assert b_pad % tb == 0

    def kernel(rid_ref, w_ref, out_ref):
        # rid_ref : VMEM (tb, l_total) int32
        # w_ref   : VMEM (k_pad, out_w) f32  (constant block across grid steps)
        # out_ref : VMEM (tb, out_w) f32
        rid = rid_ref[...]
        iota_k = lax.broadcasted_iota(jnp.int32, (1, k_pad), 1)
        counts = jnp.zeros((tb, k_pad), jnp.float32)
        # l_total is small & static: a handful of vectorized VPU compares;
        # the 1/L_f mean weight is folded into the count accumulation.
        for l, w in enumerate(col_w):
            eq = rid[:, l:l + 1] == iota_k              # (tb, k_pad)
            counts = counts + jnp.where(eq, jnp.float32(w), jnp.float32(0.0))
        # Single MXU matmul per tile; one full-lane (tb, out_w) store.
        out_ref[...] = jnp.dot(counts, w_ref[...],
                               preferred_element_type=jnp.float32)

    need = (2 * tb * l_total * 4        # double-buffered index block
            + 2 * k_pad * out_w * 4     # weight block (worst case 2 buffers)
            + 2 * tb * out_w * 4        # double-buffered output block
            + tb * k_pad * 4)           # counts vregs / spill headroom
    vmem_limit = int(min(32 * 1024 * 1024, max(16 * 1024 * 1024, 4 * need)))

    grid = (b_pad // tb,)
    return pl.pallas_call(
        kernel,
        out_shape=jax.ShapeDtypeStruct((b_pad, out_w), jnp.float32),
        grid_spec=pltpu.PrefetchScalarGridSpec(
            num_scalar_prefetch=0,
            grid=grid,
            in_specs=[
                pl.BlockSpec((tb, l_total), lambda i: (i, 0)),
                pl.BlockSpec((k_pad, out_w), lambda i: (0, 0)),
            ],
            out_specs=pl.BlockSpec((tb, out_w), lambda i: (i, 0)),
        ),
        compiler_params=pltpu.CompilerParams(
            dimension_semantics=("parallel",),
            vmem_limit_bytes=vmem_limit,
        ),
    )(rid, packed_w)


class EmbeddingLayerPallas:
    """JAX/Pallas equivalent of the PyTorch EmbeddingLayer module."""

    def __init__(self, features, embedding_size, key):
        self.features = dict(features)
        self.embedding_size = e = int(embedding_size)
        self._feature_names = list(self.features.keys())
        n_feat = len(self._feature_names)

        # One owned table per non-shared feature, ~ Normal(0, std=1e-4)
        # (torch.nn.init.normal_(weight, std=0.0001)).  Kept f32.
        self.tables = {}
        for name, feat in self.features.items():
            if feat["shared_embed_name"] is not None:
                continue
            v = len(feat["vocab"])
            key, sub = jax.random.split(key)
            self.tables[name] = (
                jax.random.normal(sub, (v, e), jnp.float32) * 1e-4)

        # Packed block weight matrix for the one-hot + MXU path:
        #   rows : one block of V_owner(f) rows PER FEATURE (shared features
        #          replicate the owner's rows),
        #   cols : feature f's table lands at output columns [f*E, (f+1)*E)
        #          of a lane-dense round128(n_feat*E)-wide output slab.
        self._out_e = n_feat * e
        self._out_w = _round_up(self._out_e, _LANE)
        self._k_off = {}
        blocks = []
        k = 0
        for i, name in enumerate(self._feature_names):
            feat = self.features[name]
            owner = (name if feat["shared_embed_name"] is None
                     else feat["shared_embed_name"])
            t = self.tables[owner]                       # (V, e)
            v = t.shape[0]
            self._k_off[name] = k
            blk = jnp.zeros((v, self._out_w), jnp.float32)
            blk = blk.at[:, i * e:(i + 1) * e].set(t)
            blocks.append(blk)
            k += v
        self._k_total = k
        self._k_pad = _round_up(max(k, _SUBLANE), _LANE)  # MXU-friendly K dim
        w = jnp.concatenate(blocks, axis=0)
        if self._k_pad > k:
            w = jnp.pad(w, ((0, self._k_pad - k), (0, 0)))
        self.packed_w = w                                 # (k_pad, out_w) f32

    def __call__(self, **kwargs):
        names = self._feature_names
        e = self.embedding_size
        b = int(kwargs[names[0]].shape[0])

        # Per-index scalar math (clamp + offset into packed-W row space) done
        # here as cheap vectorized int32 XLA ops -> no in-kernel scalar work.
        rid_cols = []
        col_w = []
        for name in names:
            feat = self.features[name]
            owner = (name if feat["shared_embed_name"] is None
                     else feat["shared_embed_name"])
            v = len(self.features[owner]["vocab"])
            x = kwargs[name].astype(jnp.int32).reshape(b, -1)
            l_f = int(x.shape[1])
            rid_cols.append(jnp.clip(x, 0, v - 1) + self._k_off[name])
            col_w.extend([1.0 / l_f] * l_f)
        rid = jnp.concatenate(rid_cols, axis=1)           # (b, l_total)

        # Batch tiling: tile <= 128 rows, bounded padding, and >=2 grid steps
        # whenever possible so the "parallel" axis can use both v7x cores.
        b8 = _round_up(b, _SUBLANE)
        n_steps = max(1, _cdiv(b8, _LANE))
        if b8 >= 2 * _SUBLANE and n_steps < 2:
            n_steps = 2
        tb = _round_up(_cdiv(b8, n_steps), _SUBLANE)
        b_pad = tb * n_steps
        if b_pad > b:
            rid = jnp.pad(rid, ((0, b_pad - b), (0, 0)))

        out = _fused_embed_lookup(rid, self.packed_w, col_w=tuple(col_w),
                                  tb=tb, k_pad=self._k_pad, out_w=self._out_w)
        return {name: out[:b, i * e:(i + 1) * e]
                for i, name in enumerate(names)}


def _reference(layer, inputs):
    """Pure-JAX reference of the torch forward pass."""
    out = {}
    for name, feat in layer.features.items():
        owner = name if feat["shared_embed_name"] is None else feat["shared_embed_name"]
        table = layer.tables[owner]
        idx = jnp.clip(inputs[name].astype(jnp.int32), 0, table.shape[0] - 1)
        emb = jnp.take(table, idx, axis=0)                # (B, L, E)
        out[name] = jnp.mean(emb, axis=1)
    return out


if __name__ == "__main__":
    key = jax.random.PRNGKey(0)

    embedding_size = 32

    # Feature config mirroring the torch module's `features` dict:
    # two owned embedding tables + one feature sharing item_id's table.
    features = {
        "user_id": {"vocab": list(range(50)), "shared_embed_name": None},
        "item_id": {"vocab": list(range(80)), "shared_embed_name": None},
        "item_hist": {"vocab": list(range(80)), "shared_embed_name": "item_id"},
    }

    key, k_params = jax.random.split(key)
    layer = EmbeddingLayerPallas(features, embedding_size, k_params)

    # Test both a single-tile batch and a padded, 2-grid-step batch.
    for batch in (8, 20):
        key, k_u, k_i, k_h = jax.random.split(key, 4)
        inputs = {
            "user_id": jax.random.randint(k_u, (batch, 1), 0, 50, jnp.int32),
            "item_id": jax.random.randint(k_i, (batch, 1), 0, 80, jnp.int32),
            "item_hist": jax.random.randint(k_h, (batch, 4), 0, 80, jnp.int32),
        }

        outs = layer(**inputs)
        outs = jax.tree_util.tree_map(jax.block_until_ready, outs)

        refs = _reference(layer, inputs)
        for name in features:
            assert outs[name].shape == (batch, embedding_size), (
                name, outs[name].shape)
            # Table values ~1e-4; tolerance leaves headroom for MXU multi-pass
            # f32 rounding while still catching any indexing/scaling bug.
            assert jnp.allclose(outs[name], refs[name],
                                rtol=5e-3, atol=2e-6), name

    print("KERNEL_OK")
</pallas_src>

<mosaic_0001>
module attributes {stable_mosaic.version = 11 : i64} {
  func.func @kernel(%arg0: i32, %arg1: memref<8x6xi32, #tpu.memory_space<vmem>>, %arg2: memref<256x128xf32, #tpu.memory_space<vmem>>, %arg3: memref<8x128xf32, #tpu.memory_space<vmem>>) attributes {dimension_semantics = [#tpu.dimension_semantics<parallel>], iteration_bounds = array<i64: 1>, scalar_prefetch = 0 : i64, scratch_operands = 0 : i64, tpu.core_type = #tpu.core_type<tc>, window_params = [{transform_indices = @transform_0, window_bounds = array<i64: 8, 6>}, {pipeline_mode = #tpu.pipeline_mode<synchronous>, transform_indices = @transform_1, window_bounds = array<i64: 256, 128>}, {transform_indices = @transform_2, window_bounds = array<i64: 8, 128>}]} {
    %c0 = arith.constant 0 : index
    %c0_0 = arith.constant 0 : index
    %0 = vector.load %arg1[%c0, %c0_0] : memref<8x6xi32, #tpu.memory_space<vmem>>, vector<8x6xi32>
    %1 = tpu.iota {dimensions = array<i32: 1>} : vector<1x256xi32>
    %cst = arith.constant 0.000000e+00 : f32
    %2 = vector.broadcast %cst : f32 to vector<8x256xf32>
    %3 = vector.extract_strided_slice %0 {offsets = [0, 0], sizes = [8, 1], strides = [1, 1]} : vector<8x6xi32> to vector<8x1xi32>
    %4 = vector.broadcast %3 : vector<8x1xi32> to vector<8x256xi32>
    %5 = vector.broadcast %1 : vector<1x256xi32> to vector<8x256xi32>
    %6 = arith.cmpi eq, %4, %5 : vector<8x256xi32>
    %cst_1 = arith.constant 1.000000e+00 : f32
    %cst_2 = arith.constant 0.000000e+00 : f32
    %7 = vector.broadcast %cst_1 : f32 to vector<8x256xf32>
    %8 = vector.broadcast %cst_2 : f32 to vector<8x256xf32>
    %9 = arith.select %6, %7, %8 : vector<8x256xi1>, vector<8x256xf32>
    %10 = arith.addf %2, %9 : vector<8x256xf32>
    %11 = vector.extract_strided_slice %0 {offsets = [0, 1], sizes = [8, 1], strides = [1, 1]} : vector<8x6xi32> to vector<8x1xi32>
    %12 = vector.broadcast %11 : vector<8x1xi32> to vector<8x256xi32>
    %13 = vector.broadcast %1 : vector<1x256xi32> to vector<8x256xi32>
    %14 = arith.cmpi eq, %12, %13 : vector<8x256xi32>
    %cst_3 = arith.constant 1.000000e+00 : f32
    %cst_4 = arith.constant 0.000000e+00 : f32
    %15 = vector.broadcast %cst_3 : f32 to vector<8x256xf32>
    %16 = vector.broadcast %cst_4 : f32 to vector<8x256xf32>
    %17 = arith.select %14, %15, %16 : vector<8x256xi1>, vector<8x256xf32>
    %18 = arith.addf %10, %17 : vector<8x256xf32>
    %19 = vector.extract_strided_slice %0 {offsets = [0, 2], sizes = [8, 1], strides = [1, 1]} : vector<8x6xi32> to vector<8x1xi32>
    %20 = vector.broadcast %19 : vector<8x1xi32> to vector<8x256xi32>
    %21 = vector.broadcast %1 : vector<1x256xi32> to vector<8x256xi32>
    %22 = arith.cmpi eq, %20, %21 : vector<8x256xi32>
    %cst_5 = arith.constant 2.500000e-01 : f32
    %cst_6 = arith.constant 0.000000e+00 : f32
    %23 = vector.broadcast %cst_5 : f32 to vector<8x256xf32>
    %24 = vector.broadcast %cst_6 : f32 to vector<8x256xf32>
    %25 = arith.select %22, %23, %24 : vector<8x256xi1>, vector<8x256xf32>
    %26 = arith.addf %18, %25 : vector<8x256xf32>
    %27 = vector.extract_strided_slice %0 {offsets = [0, 3], sizes = [8, 1], strides = [1, 1]} : vector<8x6xi32> to vector<8x1xi32>
    %28 = vector.broadcast %27 : vector<8x1xi32> to vector<8x256xi32>
    %29 = vector.broadcast %1 : vector<1x256xi32> to vector<8x256xi32>
    %30 = arith.cmpi eq, %28, %29 : vector<8x256xi32>
    %cst_7 = arith.constant 2.500000e-01 : f32
    %cst_8 = arith.constant 0.000000e+00 : f32
    %31 = vector.broadcast %cst_7 : f32 to vector<8x256xf32>
    %32 = vector.broadcast %cst_8 : f32 to vector<8x256xf32>
    %33 = arith.select %30, %31, %32 : vector<8x256xi1>, vector<8x256xf32>
    %34 = arith.addf %26, %33 : vector<8x256xf32>
    %35 = vector.extract_strided_slice %0 {offsets = [0, 4], sizes = [8, 1], strides = [1, 1]} : vector<8x6xi32> to vector<8x1xi32>
    %36 = vector.broadcast %35 : vector<8x1xi32> to vector<8x256xi32>
    %37 = vector.broadcast %1 : vector<1x256xi32> to vector<8x256xi32>
    %38 = arith.cmpi eq, %36, %37 : vector<8x256xi32>
    %cst_9 = arith.constant 2.500000e-01 : f32
    %cst_10 = arith.constant 0.000000e+00 : f32
    %39 = vector.broadcast %cst_9 : f32 to vector<8x256xf32>
    %40 = vector.broadcast %cst_10 : f32 to vector<8x256xf32>
    %41 = arith.select %38, %39, %40 : vector<8x256xi1>, vector<8x256xf32>
    %42 = arith.addf %34, %41 : vector<8x256xf32>
    %43 = vector.extract_strided_slice %0 {offsets = [0, 5], sizes = [8, 1], strides = [1, 1]} : vector<8x6xi32> to vector<8x1xi32>
    %44 = vector.broadcast %43 : vector<8x1xi32> to vector<8x256xi32>
    %45 = vector.broadcast %1 : vector<1x256xi32> to vector<8x256xi32>
    %46 = arith.cmpi eq, %44, %45 : vector<8x256xi32>
    %cst_11 = arith.constant 2.500000e-01 : f32
    %cst_12 = arith.constant 0.000000e+00 : f32
    %47 = vector.broadcast %cst_11 : f32 to vector<8x256xf32>
    %48 = vector.broadcast %cst_12 : f32 to vector<8x256xf32>
    %49 = arith.select %46, %47, %48 : vector<8x256xi1>, vector<8x256xf32>
    %50 = arith.addf %42, %49 : vector<8x256xf32>
    %c0_13 = arith.constant 0 : index
    %c0_14 = arith.constant 0 : index
    %51 = vector.load %arg2[%c0_13, %c0_14] : memref<256x128xf32, #tpu.memory_space<vmem>>, vector<256x128xf32>
    %cst_15 = arith.constant dense<0.000000e+00> : vector<8x128xf32>
    %52 = tpu.matmul %50, %51, %cst_15 {dimension_numbers = #tpu.dot_dimension_numbers<[1], [0], [0], [1], [0, 0, 1, 1], [], []>} : vector<8x256xf32>, vector<256x128xf32>, vector<8x128xf32> -> vector<8x128xf32>
    %c0_16 = arith.constant 0 : index
    %c0_17 = arith.constant 0 : index
    %53 = vector.load %arg3[%c0_16, %c0_17] : memref<8x128xf32, #tpu.memory_space<vmem>>, vector<8x128xf32>
    tpu.vector_store %arg3[%c0_16, %c0_17], %52 {strides = array<i32>} : memref<8x128xf32, #tpu.memory_space<vmem>>, vector<8x128xf32>,
    return
  }
  func.func @transform_0(%arg0: i32) -> (i32, i32) {
    %c0_i32 = arith.constant 0 : i32
    %c0_i32_0 = arith.constant 0 : i32
    return %arg0, %c0_i32 : i32, i32
  }
  func.func @transform_1(%arg0: i32) -> (i32, i32) {
    %c0_i32 = arith.constant 0 : i32
    %c0_i32_0 = arith.constant 0 : i32
    %c0_i32_1 = arith.constant 0 : i32
    return %c0_i32, %c0_i32_0 : i32, i32
  }
  func.func @transform_2(%arg0: i32) -> (i32, i32) {
    %c0_i32 = arith.constant 0 : i32
    %c0_i32_0 = arith.constant 0 : i32
    return %arg0, %c0_i32 : i32, i32
  }
}

</mosaic_0001>

<llo_original>
// kernel: _fused_embed_lookup.1
$region0: #{_fused_embed_lookup.1}
  #allocation0 [shape = 'u32[]', space=smem, size = 0x4, offset = 0x4, fixed_abs, tag = 'smem constant byte address 0x4 - core index']
  #allocation1 [shape = 'u32[144,128]{1,0:T(1,128)}', space=vmem, size = 0x12000, scoped, tag = 'internal scratch']
  %s0 = inlined_call_operand.hbm [shape: s32[8,6], index: 0, kind: input, shape index: {}]
  %s1 = inlined_call_operand.hbm [shape: f32[256,128], index: 1, kind: input, shape index: {}]
  %s2 = inlined_call_operand.hbm [shape: f32[8,128], index: 2, kind: output, shape index: {}]
  %s3 = sld [smem:[#allocation0]]
  $region26: #{_fused_embed_lookup.1} parent=0
    _
  %s5 = ssub.s32 1, %s3
  %s6 = scalar_select 0, %s5, %s3
  $region1: #{_fused_embed_lookup.1} parent=0
    #allocation2 [shape = 'u8[4096]{0}', space=vmem, size = 0x1000, scoped, tag = 'input window, operand 0, single buffered']
    #allocation3 [shape = 's32[1]{0}', space=sflag, size = 0x4, scoped, tag = 'scoped memory for _fused_embed_lookup.1']
    #allocation4 [shape = 's32[1]{0}', space=sflag, size = 0x4, scoped, tag = 'scoped memory for _fused_embed_lookup.1']
    #allocation5 [shape = 'u8[131072]{0}', space=vmem, size = 0x20000, scoped, tag = 'input window, operand 1, single buffered']
    #allocation6 [shape = 's32[1]{0}', space=sflag, size = 0x4, scoped, tag = 'scoped memory for _fused_embed_lookup.1']
    #allocation7 [shape = 'u8[4096]{0}', space=vmem, size = 0x1000, scoped, tag = 'output window, operand 0, single buffered']
    %7 = vsyncpa [#allocation3], 0
    %8 = vsyncpa [#allocation6], 0
    %9 = vsyncpa [#allocation4], 0
    // Predicated region
    $region2: #{_fused_embed_lookup.1} parent=1 // pred_check
      _
    $region3: #{_fused_embed_lookup.1} parent=1 // pred_check_branch
      %11 = sbr.rel (0) target = $region5
    $region4: #{_fused_embed_lookup.1} parent=1 // pred_region
      %s13 = ssub.s32 128, 128
      %14 = vsyncadd [#allocation3], %s13
      %s16 = sshll.u32 [#allocation2], 4
      %s17 = int_to_ptr.vmem [resolvable:$true] %s16
      %19 = dma.hbm_to_vmem [thread:$0]  %s0, 128, %s17, [#allocation3]
    $region5: #{_fused_embed_lookup.1} parent=1 // pred_fallthru
      _
    // Predicated region
    $region6: #{_fused_embed_lookup.1} parent=1 // pred_check
      _
    $region7: #{_fused_embed_lookup.1} parent=1 // pred_check_branch
      %21 = sbr.rel (0) target = $region9
    $region8: #{_fused_embed_lookup.1} parent=1 // pred_region
      %s23 = ssub.s32 4096, 4096
      %24 = vsyncadd [#allocation6], %s23
      %s25 = sshll.u32 [#allocation5], 4
      %s26 = int_to_ptr.vmem [resolvable:$true] %s25
      %31 = dma.hbm_to_vmem [thread:$0]  %s1, 4096, %s26, [#allocation6], 128, 128, 8
    $region9: #{_fused_embed_lookup.1} parent=1 // pred_fallthru
      _
    // Predicated region
    $region10: #{_fused_embed_lookup.1} parent=1 // pred_check
      _
    $region11: #{_fused_embed_lookup.1} parent=1 // pred_check_branch
      %33 = sbr.rel (0) target = $region13
    $region12: #{_fused_embed_lookup.1} parent=1 // pred_region
      %34 = dma.done [#allocation3], 128
    $region13: #{_fused_embed_lookup.1} parent=1 // pred_fallthru
      _
    // Predicated region
    $region14: #{_fused_embed_lookup.1} parent=1 // pred_check
      _
    $region15: #{_fused_embed_lookup.1} parent=1 // pred_check_branch
      %36 = sbr.rel (0) target = $region17
    $region16: #{_fused_embed_lookup.1} parent=1 // pred_region
      %37 = dma.done [#allocation6], 4096
    $region17: #{_fused_embed_lookup.1} parent=1 // pred_fallthru
      _
    %v38 = vld [vmem:[#allocation2] sm:$0xff]
    %v39 = vlaneseq
    %v40 = vand.u32 %v39, 127
    %v41 = vadd.s32 %v40, 128
    %42 = vset.pattern.permute.xlu0 0
    %43 = vperm.xlu0 %42, %v38
    %v44 = vpop.permute.xlu0 %43
    %vm45 = vcmp.eq.s32.totalorder %v44, %v40
    %vm46 = vcmp.eq.s32.totalorder %v44, %v41
    %v47 = vsel %vm45, 1.0, 0.0
    %v48 = vsel %vm46, 1.0, 0.0
    %v49 = vadd.f32 %v47, 0.0
    %v50 = vadd.f32 %v48, 0.0
    %51 = vset.pattern.permute.xlu0 1
    %52 = vperm.xlu0 %51, %v38
    %v53 = vpop.permute.xlu0 %52
    %vm54 = vcmp.eq.s32.totalorder %v53, %v40
    %vm55 = vcmp.eq.s32.totalorder %v53, %v41
    %v56 = vsel %vm54, 1.0, 0.0
    %v57 = vsel %vm55, 1.0, 0.0
    %v58 = vadd.f32 %v49, %v56
    %v59 = vadd.f32 %v50, %v57
    %60 = vset.pattern.permute.xlu0 2
    %61 = vperm.xlu0 %60, %v38
    %v62 = vpop.permute.xlu0 %61
    %vm63 = vcmp.eq.s32.totalorder %v62, %v40
    %vm64 = vcmp.eq.s32.totalorder %v62, %v41
    %v65 = vsel %vm63, 0.25, 0.0
    %v66 = vsel %vm64, 0.25, 0.0
    %v67 = vadd.f32 %v58, %v65
    %v68 = vadd.f32 %v59, %v66
    %69 = vset.pattern.permute.xlu0 3
    %70 = vperm.xlu0 %69, %v38
    %v71 = vpop.permute.xlu0 %70
    %vm72 = vcmp.eq.s32.totalorder %v71, %v40
    %vm73 = vcmp.eq.s32.totalorder %v71, %v41
    %v74 = vsel %vm72, 0.25, 0.0
    %v75 = vsel %vm73, 0.25, 0.0
    %v76 = vadd.f32 %v67, %v74
    %v77 = vadd.f32 %v68, %v75
    %78 = vset.pattern.permute.xlu0 4
    %79 = vperm.xlu0 %78, %v38
    %v80 = vpop.permute.xlu0 %79
    %vm81 = vcmp.eq.s32.totalorder %v80, %v40
    %vm82 = vcmp.eq.s32.totalorder %v80, %v41
    %v83 = vsel %vm81, 0.25, 0.0
    %v84 = vsel %vm82, 0.25, 0.0
    %v85 = vadd.f32 %v76, %v83
    %v86 = vadd.f32 %v77, %v84
    %87 = vset.pattern.permute.xlu0 5
    %88 = vperm.xlu0 %87, %v38
    %v89 = vpop.permute.xlu0 %88
    %vm90 = vcmp.eq.s32.totalorder %v89, %v40
    %vm91 = vcmp.eq.s32.totalorder %v89, %v41
    %v92 = vsel %vm90, 0.25, 0.0
    %v93 = vsel %vm91, 0.25, 0.0
    %v94 = vadd.f32 %v85, %v92
    %v95 = vadd.f32 %v86, %v93
    %v96 = vld [vmem:[#allocation5] sm:$0xff]
    %v97 = vld [vmem:[#allocation5 + $0x8] sm:$0xff]
    %v98 = vld [vmem:[#allocation5 + $0x10] sm:$0xff]
    %v99 = vld [vmem:[#allocation5 + $0x18] sm:$0xff]
    %v100 = vld [vmem:[#allocation5 + $0x20] sm:$0xff]
    %v101 = vld [vmem:[#allocation5 + $0x28] sm:$0xff]
    %v102 = vld [vmem:[#allocation5 + $0x30] sm:$0xff]
    %v103 = vld [vmem:[#allocation5 + $0x38] sm:$0xff]
    %v104 = vld [vmem:[#allocation5 + $0x40] sm:$0xff]
    %v105 = vld [vmem:[#allocation5 + $0x48] sm:$0xff]
    %v106 = vld [vmem:[#allocation5 + $0x50] sm:$0xff]
    %v107 = vld [vmem:[#allocation5 + $0x58] sm:$0xff]
    %v108 = vld [vmem:[#allocation5 + $0x60] sm:$0xff]
    %v109 = vld [vmem:[#allocation5 + $0x68] sm:$0xff]
    %v110 = vld [vmem:[#allocation5 + $0x70] sm:$0xff]
    %v111 = vld [vmem:[#allocation5 + $0x78] sm:$0xff]
    %v112 = vld [vmem:[#allocation5 + $0x80] sm:$0xff]
    %v113 = vld [vmem:[#allocation5 + $0x88] sm:$0xff]
    %v114 = vld [vmem:[#allocation5 + $0x90] sm:$0xff]
    %v115 = vld [vmem:[#allocation5 + $0x98] sm:$0xff]
    %v116 = vld [vmem:[#allocation5 + $0xa0] sm:$0xff]
    %v117 = vld [vmem:[#allocation5 + $0xa8] sm:$0xff]
    %v118 = vld [vmem:[#allocation5 + $0xb0] sm:$0xff]
    %v119 = vld [vmem:[#allocation5 + $0xb8] sm:$0xff]
    %v120 = vld [vmem:[#allocation5 + $0xc0] sm:$0xff]
    %v121 = vld [vmem:[#allocation5 + $0xc8] sm:$0xff]
    %v122 = vld [vmem:[#allocation5 + $0xd0] sm:$0xff]
    %v123 = vld [vmem:[#allocation5 + $0xd8] sm:$0xff]
    %v124 = vld [vmem:[#allocation5 + $0xe0] sm:$0xff]
    %v125 = vld [vmem:[#allocation5 + $0xe8] sm:$0xff]
    %v126 = vld [vmem:[#allocation5 + $0xf0] sm:$0xff]
    %v127 = vld [vmem:[#allocation5 + $0xf8] sm:$0xff]
    %128 = vmatprep.subr.mxu0 0.0
    %129 = vmatpush1.msra.mxu0 %v111
    %130 = vmatprep.subr.mxu0 0.0
    %131 = vmatpush1.msra.mxu0 %v110
    %132 = vmatprep.subr.mxu0 0.0
    %133 = vmatpush1.msra.mxu0 %v109
    %134 = vmatprep.subr.mxu0 0.0
    %135 = vmatpush1.msra.mxu0 %v108
    %136 = vmatprep.subr.mxu0 0.0
    %137 = vmatpush1.msra.mxu0 %v107
    %138 = vmatprep.subr.mxu0 0.0
    %139 = vmatpush1.msra.mxu0 %v106
    %140 = vmatprep.subr.mxu0 0.0
    %141 = vmatpush1.msra.mxu0 %v105
    %142 = vmatprep.subr.mxu0 0.0
    %143 = vmatpush1.msra.mxu0 %v104
    %144 = vmatprep.subr.mxu0 0.0
    %145 = vmatpush1.msra.mxu0 %v103
    %146 = vmatprep.subr.mxu0 0.0
    %147 = vmatpush1.msra.mxu0 %v102
    %148 = vmatprep.subr.mxu0 0.0
    %149 = vmatpush1.msra.mxu0 %v101
    %150 = vmatprep.subr.mxu0 0.0
    %151 = vmatpush1.msra.mxu0 %v100
    %152 = vmatprep.subr.mxu0 0.0
    %153 = vmatpush1.msra.mxu0 %v99
    %154 = vmatprep.subr.mxu0 0.0
    %155 = vmatpush1.msra.mxu0 %v98
    %156 = vmatprep.subr.mxu0 0.0
    %157 = vmatpush1.msra.mxu0 %v97
    %158 = vmatprep.subr.mxu0 0.0
    %159 = vmatpush1.msra.mxu0 %v96
    %160 = vmatprep.subr.mxu0 0.0
    %161 = vmatpush2.msra.mxu0 %v127
    %162 = vmatprep.subr.mxu0 0.0
    %163 = vmatpush2.msra.mxu0 %v126
    %164 = vmatprep.subr.mxu0 0.0
    %165 = vmatpush2.msra.mxu0 %v125
    %166 = vmatprep.subr.mxu0 0.0
    %167 = vmatpush2.msra.mxu0 %v124
    %168 = vmatprep.subr.mxu0 0.0
    %169 = vmatpush2.msra.mxu0 %v123
    %170 = vmatprep.subr.mxu0 0.0
    %171 = vmatpush2.msra.mxu0 %v122
    %172 = vmatprep.subr.mxu0 0.0
    %173 = vmatpush2.msra.mxu0 %v121
    %174 = vmatprep.subr.mxu0 0.0
    %175 = vmatpush2.msra.mxu0 %v120
    %176 = vmatprep.subr.mxu0 0.0
    %177 = vmatpush2.msra.mxu0 %v119
    %178 = vmatprep.subr.mxu0 0.0
    %179 = vmatpush2.msra.mxu0 %v118
    %180 = vmatprep.subr.mxu0 0.0
    %181 = vmatpush2.msra.mxu0 %v117
    %182 = vmatprep.subr.mxu0 0.0
    %183 = vmatpush2.msra.mxu0 %v116
    %184 = vmatprep.subr.mxu0 0.0
    %185 = vmatpush2.msra.mxu0 %v115
    %186 = vmatprep.subr.mxu0 0.0
    %187 = vmatpush2.msra.mxu0 %v114
    %188 = vmatprep.subr.mxu0 0.0
    %189 = vmatpush2.msra.mxu0 %v113
    %190 = vmatprep.subr.mxu0 0.0
    %191 = vmatpush2.msra.mxu0 %v112
    %192 = vmatprep.mubr.f32.mxu0 %v95
    %193 = vmatmul.mubr.f32.gmra.mxu0 %v94
    %v194 = vpop.f32.mrf.mxu0
    %v195 = vadd.f32 0.0, %v194
    %v196 = vpop.f32.mrf.mxu0
    %197 = vdwg.mxu0
    %198 = vst [vmem:[#allocation7] sm:$0xff] %v195
    // Predicated region
    $region18: #{_fused_embed_lookup.1} parent=1 // pred_check
      _
    $region19: #{_fused_embed_lookup.1} parent=1 // pred_check_branch
      %200 = sbr.rel (0) target = $region21
    $region20: #{_fused_embed_lookup.1} parent=1 // pred_region
      %s202 = ssub.s32 128, 128
      %203 = vsyncadd [#allocation4], %s202
      %s205 = sshll.u32 [#allocation7], 4
      %s206 = int_to_ptr.vmem [resolvable:$true] %s205
      %208 = dma.vmem_to_hbm [thread:$0]  %s206, 128, %s2, [#allocation4]
    $region21: #{_fused_embed_lookup.1} parent=1 // pred_fallthru
      _
    // Predicated region
    $region22: #{_fused_embed_lookup.1} parent=1 // pred_check
      _
    $region23: #{_fused_embed_lookup.1} parent=1 // pred_check_branch
      %210 = sbr.rel (0) target = $region25
    $region24: #{_fused_embed_lookup.1} parent=1 // pred_region
      %211 = dma.done [#allocation4], 128
    $region25: #{_fused_embed_lookup.1} parent=1 // pred_fallthru
      _
    %212 = vsyncpa [#allocation3], 1
    %213 = vsyncpa [#allocation6], 1
    %214 = vsyncpa [#allocation4], 1

</llo_original>
